<compile_context>
chip_gen: v7x
topology: tpu7x:2x2x1
jax: 0.10.0
libtpu: 0.0.40
codegen_flags: <defaults>
</compile_context>

<pallas_src>
import functools
import math

import jax
import jax.numpy as jnp
from jax.experimental import pallas as pl
from jax.experimental.pallas import tpu as pltpu


def _group_onehot(n_fine, n_coarse, group, fine_axis):
    """0/1 selector with entry 1 iff fine_index // group == coarse_index.

    Built from 2-D iotas + compares (no integer division) so it is generated
    on-chip by the VPU instead of being DMA'd from HBM.
    """
    if fine_axis == 0:
        shape = (n_fine, n_coarse)
        fine = jax.lax.broadcasted_iota(jnp.int32, shape, 0)
        coarse = jax.lax.broadcasted_iota(jnp.int32, shape, 1)
    else:
        shape = (n_coarse, n_fine)
        coarse = jax.lax.broadcasted_iota(jnp.int32, shape, 0)
        fine = jax.lax.broadcasted_iota(jnp.int32, shape, 1)
    lo = coarse * group
    return jnp.logical_and(fine >= lo, fine < lo + group).astype(jnp.float32)


def _sandhi_attention_kernel(hidden_ref, enc_ref, mask_ref,
                             wq_ref, wkv_ref, wo_ref, bo_ref,
                             out_ref, attn_ref,
                             *, num_heads, head_dim, seq_len, batch_block,
                             inv_scale):
    H, hd, S, Bb = num_heads, head_dim, seq_len, batch_block
    D = H * hd
    R = Bb * S                                   # rows of the flattened block

    # On-chip 0/1 selector matrices (VPU iota + compare; no HBM traffic).
    sel = _group_onehot(D, H, hd, fine_axis=0)         # (D, H): feature -> head
    selT = _group_onehot(D, H, hd, fine_axis=1)        # (H, D)
    qsel = _group_onehot(R, Bb, S, fine_axis=0)        # (R, Bb): row -> batch
    segT = _group_onehot(R, Bb, S, fine_axis=1)        # (Bb, R)

    # ---- Projections: one batched matmul each (bf16 operands, f32 acc). ----
    q = jnp.dot(hidden_ref[...], wq_ref[...],
                preferred_element_type=jnp.float32)            # (Bb, D)
    kv = jnp.dot(enc_ref[...], wkv_ref[...],
                 preferred_element_type=jnp.float32)           # (R, 2D) fused K|V
    k = kv[:, :D]                                              # (R, D)
    v = kv[:, D:]                                              # (R, D)

    # Broadcast each batch's query over its S rows (exact one-hot matmul).
    q_rows = jnp.dot(qsel, q, preferred_element_type=jnp.float32)   # (R, D)

    # ---- Per-head scaled scores + masking. ----
    scores = jnp.dot(k * q_rows, sel,
                     preferred_element_type=jnp.float32) * inv_scale  # (R, H)
    # torch masked_fill(mask == 0, -1e9): keep compare+select (not an additive
    # bias) so the all-masked-row -> uniform-softmax corner case matches torch.
    scores = jnp.where(mask_ref[...] == 0.0, -1000000000.0, scores)

    # ---- Segmented softmax over the sequence rows of each batch. ----
    # Per-batch row-max, scattered back with 0/1 columns (pure VPU, static
    # unroll over the small per-block batch Bb).
    m_full = jnp.zeros((R, H), dtype=jnp.float32)
    for b in range(Bb):
        m_b = jnp.max(scores[b * S:(b + 1) * S, :], axis=0, keepdims=True)
        m_full = m_full + qsel[:, b:b + 1] * m_b
    e = jnp.exp(scores - m_full)                                      # (R, H)
    den_seg = jnp.dot(segT, e, preferred_element_type=jnp.float32)    # (Bb, H)
    den_full = jnp.dot(qsel, den_seg, preferred_element_type=jnp.float32)
    attn = e / den_full                                               # (R, H)

    # attention_weights.squeeze(2).mean(dim=1): per-batch mean over heads.
    # (tiny SxH transpose; any formulation needs this sublane->lane move)
    for b in range(Bb):
        attn_b = attn[b * S:(b + 1) * S, :]                           # (S, H)
        attn_ref[pl.ds(b, 1), :] = jnp.mean(jnp.transpose(attn_b),
                                            axis=0, keepdims=True)    # (1, S)

    # ---- Context and output projection (batched). ----
    attn_full = jnp.dot(attn, selT,
                        preferred_element_type=jnp.float32)           # (R, D)
    ctx = jnp.dot(segT, attn_full * v,
                  preferred_element_type=jnp.float32)                 # (Bb, D)
    out_ref[...] = jnp.dot(ctx.astype(wo_ref.dtype), wo_ref[...],
                           preferred_element_type=jnp.float32) + bo_ref[...]


def sandhi_attention(hidden, encoder_outputs, Wq, Wk, Wv, Wo, bo, num_heads,
                     mask=None, *, num_batch_blocks=1,
                     matmul_dtype=jnp.bfloat16):
    """Pallas implementation of SandhiAttention.forward (inference).

    num_batch_blocks: number of grid steps the batch is split into.  1 (the
      default) processes the whole batch in a single kernel invocation; use 2
      on v7x so both TensorCores get a block (the grid axis is "parallel").
    matmul_dtype: dtype matmul operands are cast to (bfloat16 is MXU-native on
      v5e/v6e/v7x; accumulation is always float32).
    """
    if hidden.ndim == 3:
        hidden = hidden[-1]                                   # (B, D)
    B, S, E2 = encoder_outputs.shape
    D = Wq.shape[1]
    assert D % num_heads == 0
    assert B % num_batch_blocks == 0
    head_dim = D // num_heads
    Bb = B // num_batch_blocks
    R = Bb * S

    if mask is None:
        mask = jnp.ones((B, S), dtype=jnp.float32)

    # Flatten (B, S, .) -> (B*S, .) so the K/V projection is one big-M matmul
    # and every block is a plain 2-D tile.
    hidden2 = hidden.astype(matmul_dtype)                                # (B, D)
    enc_flat = encoder_outputs.reshape(B * S, E2).astype(matmul_dtype)   # (B*S, 2E)
    mask_flat = mask.astype(jnp.float32).reshape(B * S, 1)               # (B*S, 1)
    # Fused K|V projection weight: one enc @ Wkv matmul instead of two.
    Wkv = jnp.concatenate([Wk, Wv], axis=1).astype(matmul_dtype)         # (2E, 2D)
    Wq2 = Wq.astype(matmul_dtype)
    Wo2 = Wo.astype(matmul_dtype)
    bo2 = bo.reshape(1, D).astype(jnp.float32)

    kernel = functools.partial(
        _sandhi_attention_kernel,
        num_heads=num_heads, head_dim=head_dim, seq_len=S, batch_block=Bb,
        inv_scale=1.0 / math.sqrt(head_dim))

    # NOTE: the weight blocks are grid-invariant; at production sizes mark them
    # single-buffered (pipeline_mode=pl.Buffered(1)) to halve their VMEM
    # footprint -- irrelevant at these toy shapes.
    out, attn_mean = pl.pallas_call(
        kernel,
        out_shape=(jax.ShapeDtypeStruct((B, D), jnp.float32),
                   jax.ShapeDtypeStruct((B, S), jnp.float32)),
        grid=(num_batch_blocks,),
        in_specs=[
            pl.BlockSpec((Bb, D), lambda i: (i, 0)),         # hidden (last layer)
            pl.BlockSpec((R, E2), lambda i: (i, 0)),         # encoder rows (flat)
            pl.BlockSpec((R, 1), lambda i: (i, 0)),          # mask rows (flat)
            pl.BlockSpec((D, D), lambda i: (0, 0)),          # Wq
            pl.BlockSpec((E2, 2 * D), lambda i: (0, 0)),     # Wkv (fused K|V)
            pl.BlockSpec((D, D), lambda i: (0, 0)),          # Wo
            pl.BlockSpec((1, D), lambda i: (0, 0)),          # bo
        ],
        out_specs=(
            pl.BlockSpec((Bb, D), lambda i: (i, 0)),         # out_proj(context)
            pl.BlockSpec((Bb, S), lambda i: (i, 0)),         # mean attn weights
        ),
        compiler_params=pltpu.CompilerParams(
            dimension_semantics=("parallel",)),
    )(hidden2, enc_flat, mask_flat, Wq2, Wkv, Wo2, bo2)
    return out, attn_mean


def _reference(hidden, encoder_outputs, Wq, Wk, Wv, Wo, bo, num_heads, mask):
    """Pure-JAX f32 replica of the torch forward pass (for verification)."""
    if hidden.ndim == 3:
        hidden = hidden[-1]
    B, S, _ = encoder_outputs.shape
    D = Wq.shape[1]
    hd = D // num_heads
    q = hidden @ Wq                                              # (B, D)
    k = encoder_outputs @ Wk                                     # (B, S, D)
    v = encoder_outputs @ Wv
    qh = q.reshape(B, 1, num_heads, hd).transpose(0, 2, 1, 3)    # (B,H,1,hd)
    kh = k.reshape(B, S, num_heads, hd).transpose(0, 2, 1, 3)    # (B,H,S,hd)
    vh = v.reshape(B, S, num_heads, hd).transpose(0, 2, 1, 3)    # (B,H,S,hd)
    scores = jnp.einsum('bhqd,bhkd->bhqk', qh, kh) / math.sqrt(hd)
    scores = jnp.where(mask[:, None, None, :] == 0, -1000000000.0, scores)
    attn = jax.nn.softmax(scores, axis=-1)                       # (B,H,1,S)
    ctx = jnp.einsum('bhqk,bhkd->bhqd', attn, vh)                # (B,H,1,hd)
    ctx = ctx.transpose(0, 2, 1, 3).reshape(B, D)
    out = ctx @ Wo + bo
    attn_mean = attn[:, :, 0, :].mean(axis=1)                    # (B, S)
    return out, attn_mean


if __name__ == "__main__":
    # Small shapes consistent with the module:
    #   encoder_hidden_size E = 16 (key/value input dim = 2E = 32)
    #   decoder_hidden_size D = 32, num_heads H = 8, head_dim = 4
    #   batch B = 2, sequence length S = 8, num decoder layers L = 2
    B, S, E, D, H, L = 2, 8, 16, 32, 8, 2

    key = jax.random.PRNGKey(0)
    keys = jax.random.split(key, 8)

    hidden = jax.random.normal(keys[0], (L, B, D), dtype=jnp.float32)
    encoder_outputs = jax.random.normal(keys[1], (B, S, 2 * E), dtype=jnp.float32)

    # Deterministic synthetic parameters (stored [in, out]).
    Wq = 0.1 * jax.random.normal(keys[2], (D, D), dtype=jnp.float32)
    Wk = 0.1 * jax.random.normal(keys[3], (2 * E, D), dtype=jnp.float32)
    Wv = 0.1 * jax.random.normal(keys[4], (2 * E, D), dtype=jnp.float32)
    Wo = 0.1 * jax.random.normal(keys[5], (D, D), dtype=jnp.float32)
    bo = 0.1 * jax.random.normal(keys[6], (D,), dtype=jnp.float32)

    # Padding-style mask: batch 1 has its last two positions masked out.
    mask = jnp.ones((B, S), dtype=jnp.float32)
    mask = mask.at[1, S - 2:].set(0.0)

    ref_out, ref_attn = _reference(hidden, encoder_outputs,
                                   Wq, Wk, Wv, Wo, bo, H, mask)

    # 1) float32-operand path: tight check against the pure-JAX reference.
    out32, attn32 = sandhi_attention(hidden, encoder_outputs,
                                     Wq, Wk, Wv, Wo, bo, H, mask=mask,
                                     matmul_dtype=jnp.float32)
    out32 = jax.block_until_ready(out32)
    attn32 = jax.block_until_ready(attn32)
    assert out32.shape == (B, D) and attn32.shape == (B, S)
    assert jnp.allclose(out32, ref_out, atol=2e-4, rtol=2e-4)
    assert jnp.allclose(attn32, ref_attn, atol=5e-5, rtol=1e-4)

    # 2) default bfloat16-operand path (MXU-native): looser tolerance.
    out16, attn16 = sandhi_attention(hidden, encoder_outputs,
                                     Wq, Wk, Wv, Wo, bo, H, mask=mask)
    out16 = jax.block_until_ready(out16)
    attn16 = jax.block_until_ready(attn16)
    assert out16.shape == (B, D) and attn16.shape == (B, S)
    assert jnp.allclose(out16, ref_out, atol=2e-2, rtol=2e-2)
    assert jnp.allclose(attn16, ref_attn, atol=1e-2, rtol=2e-2)

    print("KERNEL_OK")
</pallas_src>

<mosaic_0001>
module attributes {stable_mosaic.version = 11 : i64} {
  func.func @_sandhi_attention_kernel(%arg0: i32, %arg1: memref<2x32xf32, #tpu.memory_space<vmem>>, %arg2: memref<16x32xf32, #tpu.memory_space<vmem>>, %arg3: memref<16x1xf32, #tpu.memory_space<vmem>>, %arg4: memref<32x32xf32, #tpu.memory_space<vmem>>, %arg5: memref<32x64xf32, #tpu.memory_space<vmem>>, %arg6: memref<32x32xf32, #tpu.memory_space<vmem>>, %arg7: memref<1x32xf32, #tpu.memory_space<vmem>>, %arg8: memref<2x32xf32, #tpu.memory_space<vmem>>, %arg9: memref<2x8xf32, #tpu.memory_space<vmem>>) attributes {dimension_semantics = [#tpu.dimension_semantics<parallel>], iteration_bounds = array<i64: 1>, scalar_prefetch = 0 : i64, scratch_operands = 0 : i64, tpu.core_type = #tpu.core_type<tc>, window_params = [{transform_indices = @transform_0, window_bounds = array<i64: 2, 32>}, {transform_indices = @transform_1, window_bounds = array<i64: 16, 32>}, {transform_indices = @transform_2, window_bounds = array<i64: 16, 1>}, {pipeline_mode = #tpu.pipeline_mode<synchronous>, transform_indices = @transform_3, window_bounds = array<i64: 32, 32>}, {pipeline_mode = #tpu.pipeline_mode<synchronous>, transform_indices = @transform_4, window_bounds = array<i64: 32, 64>}, {pipeline_mode = #tpu.pipeline_mode<synchronous>, transform_indices = @transform_5, window_bounds = array<i64: 32, 32>}, {pipeline_mode = #tpu.pipeline_mode<synchronous>, transform_indices = @transform_6, window_bounds = array<i64: 1, 32>}, {transform_indices = @transform_7, window_bounds = array<i64: 2, 32>}, {transform_indices = @transform_8, window_bounds = array<i64: 2, 8>}]} {
    %0 = tpu.iota {dimensions = array<i32: 0>} : vector<32x8xi32>
    %1 = tpu.iota {dimensions = array<i32: 1>} : vector<32x8xi32>
    %c4_i32 = arith.constant 4 : i32
    %2 = vector.broadcast %c4_i32 : i32 to vector<32x8xi32>
    %3 = arith.muli %1, %2 : vector<32x8xi32>
    %4 = arith.cmpi sge, %0, %3 : vector<32x8xi32>
    %c4_i32_0 = arith.constant 4 : i32
    %5 = vector.broadcast %c4_i32_0 : i32 to vector<32x8xi32>
    %6 = arith.addi %3, %5 : vector<32x8xi32>
    %7 = arith.cmpi slt, %0, %6 : vector<32x8xi32>
    %8 = arith.andi %4, %7 : vector<32x8xi1>
    %9 = arith.extui %8 : vector<32x8xi1> to vector<32x8xi32>
    %10 = arith.sitofp %9 : vector<32x8xi32> to vector<32x8xf32>
    %11 = tpu.iota {dimensions = array<i32: 0>} : vector<8x32xi32>
    %12 = tpu.iota {dimensions = array<i32: 1>} : vector<8x32xi32>
    %c4_i32_1 = arith.constant 4 : i32
    %13 = vector.broadcast %c4_i32_1 : i32 to vector<8x32xi32>
    %14 = arith.muli %11, %13 : vector<8x32xi32>
    %15 = arith.cmpi sge, %12, %14 : vector<8x32xi32>
    %c4_i32_2 = arith.constant 4 : i32
    %16 = vector.broadcast %c4_i32_2 : i32 to vector<8x32xi32>
    %17 = arith.addi %14, %16 : vector<8x32xi32>
    %18 = arith.cmpi slt, %12, %17 : vector<8x32xi32>
    %19 = arith.andi %15, %18 : vector<8x32xi1>
    %20 = arith.extui %19 : vector<8x32xi1> to vector<8x32xi32>
    %21 = arith.sitofp %20 : vector<8x32xi32> to vector<8x32xf32>
    %22 = tpu.iota {dimensions = array<i32: 0>} : vector<16x2xi32>
    %23 = tpu.iota {dimensions = array<i32: 1>} : vector<16x2xi32>
    %c8_i32 = arith.constant 8 : i32
    %24 = vector.broadcast %c8_i32 : i32 to vector<16x2xi32>
    %25 = arith.muli %23, %24 : vector<16x2xi32>
    %26 = arith.cmpi sge, %22, %25 : vector<16x2xi32>
    %c8_i32_3 = arith.constant 8 : i32
    %27 = vector.broadcast %c8_i32_3 : i32 to vector<16x2xi32>
    %28 = arith.addi %25, %27 : vector<16x2xi32>
    %29 = arith.cmpi slt, %22, %28 : vector<16x2xi32>
    %30 = arith.andi %26, %29 : vector<16x2xi1>
    %31 = arith.extui %30 : vector<16x2xi1> to vector<16x2xi32>
    %32 = arith.sitofp %31 : vector<16x2xi32> to vector<16x2xf32>
    %33 = tpu.iota {dimensions = array<i32: 0>} : vector<2x16xi32>
    %34 = tpu.iota {dimensions = array<i32: 1>} : vector<2x16xi32>
    %c8_i32_4 = arith.constant 8 : i32
    %35 = vector.broadcast %c8_i32_4 : i32 to vector<2x16xi32>
    %36 = arith.muli %33, %35 : vector<2x16xi32>
    %37 = arith.cmpi sge, %34, %36 : vector<2x16xi32>
    %c8_i32_5 = arith.constant 8 : i32
    %38 = vector.broadcast %c8_i32_5 : i32 to vector<2x16xi32>
    %39 = arith.addi %36, %38 : vector<2x16xi32>
    %40 = arith.cmpi slt, %34, %39 : vector<2x16xi32>
    %41 = arith.andi %37, %40 : vector<2x16xi1>
    %42 = arith.extui %41 : vector<2x16xi1> to vector<2x16xi32>
    %43 = arith.sitofp %42 : vector<2x16xi32> to vector<2x16xf32>
    %c0 = arith.constant 0 : index
    %c0_6 = arith.constant 0 : index
    %44 = vector.load %arg1[%c0, %c0_6] : memref<2x32xf32, #tpu.memory_space<vmem>>, vector<2x32xf32>
    %c0_7 = arith.constant 0 : index
    %c0_8 = arith.constant 0 : index
    %45 = vector.load %arg4[%c0_7, %c0_8] : memref<32x32xf32, #tpu.memory_space<vmem>>, vector<32x32xf32>
    %cst = arith.constant dense<0.000000e+00> : vector<2x32xf32>
    %46 = tpu.matmul %44, %45, %cst {dimension_numbers = #tpu.dot_dimension_numbers<[1], [0], [0], [1], [0, 0, 1, 1], [], []>} : vector<2x32xf32>, vector<32x32xf32>, vector<2x32xf32> -> vector<2x32xf32>
    %c0_9 = arith.constant 0 : index
    %c0_10 = arith.constant 0 : index
    %47 = vector.load %arg2[%c0_9, %c0_10] : memref<16x32xf32, #tpu.memory_space<vmem>>, vector<16x32xf32>
    %c0_11 = arith.constant 0 : index
    %c0_12 = arith.constant 0 : index
    %48 = vector.load %arg5[%c0_11, %c0_12] : memref<32x64xf32, #tpu.memory_space<vmem>>, vector<32x64xf32>
    %cst_13 = arith.constant dense<0.000000e+00> : vector<16x64xf32>
    %49 = tpu.matmul %47, %48, %cst_13 {dimension_numbers = #tpu.dot_dimension_numbers<[1], [0], [0], [1], [0, 0, 1, 1], [], []>} : vector<16x32xf32>, vector<32x64xf32>, vector<16x64xf32> -> vector<16x64xf32>
    %50 = vector.extract_strided_slice %49 {offsets = [0, 0], sizes = [16, 32], strides = [1, 1]} : vector<16x64xf32> to vector<16x32xf32>
    %51 = vector.extract_strided_slice %49 {offsets = [0, 32], sizes = [16, 32], strides = [1, 1]} : vector<16x64xf32> to vector<16x32xf32>
    %cst_14 = arith.constant dense<0.000000e+00> : vector<16x32xf32>
    %52 = tpu.matmul %32, %46, %cst_14 {dimension_numbers = #tpu.dot_dimension_numbers<[1], [0], [0], [1], [0, 0, 1, 1], [], []>} : vector<16x2xf32>, vector<2x32xf32>, vector<16x32xf32> -> vector<16x32xf32>
    %53 = arith.mulf %50, %52 : vector<16x32xf32>
    %cst_15 = arith.constant dense<0.000000e+00> : vector<16x8xf32>
    %54 = tpu.matmul %53, %10, %cst_15 {dimension_numbers = #tpu.dot_dimension_numbers<[1], [0], [0], [1], [0, 0, 1, 1], [], []>} : vector<16x32xf32>, vector<32x8xf32>, vector<16x8xf32> -> vector<16x8xf32>
    %cst_16 = arith.constant 5.000000e-01 : f32
    %55 = vector.broadcast %cst_16 : f32 to vector<16x8xf32>
    %56 = arith.mulf %54, %55 : vector<16x8xf32>
    %c0_17 = arith.constant 0 : index
    %c0_18 = arith.constant 0 : index
    %57 = vector.load %arg3[%c0_17, %c0_18] : memref<16x1xf32, #tpu.memory_space<vmem>>, vector<16x1xf32>
    %cst_19 = arith.constant 0.000000e+00 : f32
    %58 = vector.broadcast %cst_19 : f32 to vector<16x1xf32>
    %59 = arith.cmpf oeq, %57, %58 : vector<16x1xf32>
    %cst_20 = arith.constant -1.000000e+09 : f32
    %60 = vector.shape_cast %59 : vector<16x1xi1> to vector<16x1xi1>
    %61 = vector.broadcast %60 : vector<16x1xi1> to vector<16x8xi1>
    %62 = vector.broadcast %cst_20 : f32 to vector<16x8xf32>
    %63 = arith.select %61, %62, %56 : vector<16x8xi1>, vector<16x8xf32>
    %cst_21 = arith.constant 0.000000e+00 : f32
    %64 = vector.broadcast %cst_21 : f32 to vector<16x8xf32>
    %65 = vector.extract_strided_slice %63 {offsets = [0, 0], sizes = [8, 8], strides = [1, 1]} : vector<16x8xf32> to vector<8x8xf32>
    %cst_22 = arith.constant dense<0xFF800000> : vector<8xf32>
    %66 = vector.multi_reduction <maximumf>, %65, %cst_22 [0] : vector<8x8xf32> to vector<8xf32>
    %67 = vector.shape_cast %66 : vector<8xf32> to vector<1x8xf32>
    %68 = vector.extract_strided_slice %32 {offsets = [0, 0], sizes = [16, 1], strides = [1, 1]} : vector<16x2xf32> to vector<16x1xf32>
    %69 = vector.broadcast %68 : vector<16x1xf32> to vector<16x8xf32>
    %70 = vector.broadcast %67 : vector<1x8xf32> to vector<16x8xf32>
    %71 = arith.mulf %69, %70 : vector<16x8xf32>
    %72 = arith.addf %64, %71 : vector<16x8xf32>
    %73 = vector.extract_strided_slice %63 {offsets = [8, 0], sizes = [8, 8], strides = [1, 1]} : vector<16x8xf32> to vector<8x8xf32>
    %cst_23 = arith.constant dense<0xFF800000> : vector<8xf32>
    %74 = vector.multi_reduction <maximumf>, %73, %cst_23 [0] : vector<8x8xf32> to vector<8xf32>
    %75 = vector.shape_cast %74 : vector<8xf32> to vector<1x8xf32>
    %76 = vector.extract_strided_slice %32 {offsets = [0, 1], sizes = [16, 1], strides = [1, 1]} : vector<16x2xf32> to vector<16x1xf32>
    %77 = vector.broadcast %76 : vector<16x1xf32> to vector<16x8xf32>
    %78 = vector.broadcast %75 : vector<1x8xf32> to vector<16x8xf32>
    %79 = arith.mulf %77, %78 : vector<16x8xf32>
    %80 = arith.addf %72, %79 : vector<16x8xf32>
    %81 = arith.subf %63, %80 : vector<16x8xf32>
    %82 = math.exp %81 : vector<16x8xf32>
    %cst_24 = arith.constant dense<0.000000e+00> : vector<2x8xf32>
    %83 = tpu.matmul %43, %82, %cst_24 {dimension_numbers = #tpu.dot_dimension_numbers<[1], [0], [0], [1], [0, 0, 1, 1], [], []>} : vector<2x16xf32>, vector<16x8xf32>, vector<2x8xf32> -> vector<2x8xf32>
    %cst_25 = arith.constant dense<0.000000e+00> : vector<16x8xf32>
    %84 = tpu.matmul %32, %83, %cst_25 {dimension_numbers = #tpu.dot_dimension_numbers<[1], [0], [0], [1], [0, 0, 1, 1], [], []>} : vector<16x2xf32>, vector<2x8xf32>, vector<16x8xf32> -> vector<16x8xf32>
    %85 = arith.divf %82, %84 : vector<16x8xf32>
    %86 = vector.extract_strided_slice %85 {offsets = [0, 0], sizes = [8, 8], strides = [1, 1]} : vector<16x8xf32> to vector<8x8xf32>
    %87 = tpu.transpose %86, [1, 0] : vector<8x8xf32> -> vector<8x8xf32>
    %cst_26 = arith.constant dense<0.000000e+00> : vector<8xf32>
    %88 = vector.multi_reduction <add>, %87, %cst_26 [0] : vector<8x8xf32> to vector<8xf32>
    %89 = vector.shape_cast %88 : vector<8xf32> to vector<1x8xf32>
    %cst_27 = arith.constant 8.000000e+00 : f32
    %90 = vector.broadcast %cst_27 : f32 to vector<1x8xf32>
    %91 = arith.divf %89, %90 : vector<1x8xf32>
    %c0_28 = arith.constant 0 : index
    %c0_29 = arith.constant 0 : index
    %92 = vector.load %arg9[%c0_28, %c0_29] : memref<2x8xf32, #tpu.memory_space<vmem>>, vector<1x8xf32>
    tpu.vector_store %arg9[%c0_28, %c0_29], %91 {strides = array<i32>} : memref<2x8xf32, #tpu.memory_space<vmem>>, vector<1x8xf32>,
    %93 = vector.extract_strided_slice %85 {offsets = [8, 0], sizes = [8, 8], strides = [1, 1]} : vector<16x8xf32> to vector<8x8xf32>
    %94 = tpu.transpose %93, [1, 0] : vector<8x8xf32> -> vector<8x8xf32>
    %cst_30 = arith.constant dense<0.000000e+00> : vector<8xf32>
    %95 = vector.multi_reduction <add>, %94, %cst_30 [0] : vector<8x8xf32> to vector<8xf32>
    %96 = vector.shape_cast %95 : vector<8xf32> to vector<1x8xf32>
    %cst_31 = arith.constant 8.000000e+00 : f32
    %97 = vector.broadcast %cst_31 : f32 to vector<1x8xf32>
    %98 = arith.divf %96, %97 : vector<1x8xf32>
    %c1 = arith.constant 1 : index
    %c0_32 = arith.constant 0 : index
    %99 = vector.load %arg9[%c1, %c0_32] : memref<2x8xf32, #tpu.memory_space<vmem>>, vector<1x8xf32>
    tpu.vector_store %arg9[%c1, %c0_32], %98 {strides = array<i32>} : memref<2x8xf32, #tpu.memory_space<vmem>>, vector<1x8xf32>,
    %cst_33 = arith.constant dense<0.000000e+00> : vector<16x32xf32>
    %100 = tpu.matmul %85, %21, %cst_33 {dimension_numbers = #tpu.dot_dimension_numbers<[1], [0], [0], [1], [0, 0, 1, 1], [], []>} : vector<16x8xf32>, vector<8x32xf32>, vector<16x32xf32> -> vector<16x32xf32>
    %101 = arith.mulf %100, %51 : vector<16x32xf32>
    %cst_34 = arith.constant dense<0.000000e+00> : vector<2x32xf32>
    %102 = tpu.matmul %43, %101, %cst_34 {dimension_numbers = #tpu.dot_dimension_numbers<[1], [0], [0], [1], [0, 0, 1, 1], [], []>} : vector<2x16xf32>, vector<16x32xf32>, vector<2x32xf32> -> vector<2x32xf32>
    %c0_35 = arith.constant 0 : index
    %c0_36 = arith.constant 0 : index
    %103 = vector.load %arg6[%c0_35, %c0_36] : memref<32x32xf32, #tpu.memory_space<vmem>>, vector<32x32xf32>
    %cst_37 = arith.constant dense<0.000000e+00> : vector<2x32xf32>
    %104 = tpu.matmul %102, %103, %cst_37 {dimension_numbers = #tpu.dot_dimension_numbers<[1], [0], [0], [1], [0, 0, 1, 1], [], []>} : vector<2x32xf32>, vector<32x32xf32>, vector<2x32xf32> -> vector<2x32xf32>
    %c0_38 = arith.constant 0 : index
    %c0_39 = arith.constant 0 : index
    %105 = vector.load %arg7[%c0_38, %c0_39] : memref<1x32xf32, #tpu.memory_space<vmem>>, vector<1x32xf32>
    %106 = vector.broadcast %105 : vector<1x32xf32> to vector<2x32xf32>
    %107 = arith.addf %104, %106 : vector<2x32xf32>
    %c0_40 = arith.constant 0 : index
    %c0_41 = arith.constant 0 : index
    %108 = vector.load %arg8[%c0_40, %c0_41] : memref<2x32xf32, #tpu.memory_space<vmem>>, vector<2x32xf32>
    tpu.vector_store %arg8[%c0_40, %c0_41], %107 {strides = array<i32>} : memref<2x32xf32, #tpu.memory_space<vmem>>, vector<2x32xf32>,
    return
  }
  func.func @transform_0(%arg0: i32) -> (i32, i32) {
    %c0_i32 = arith.constant 0 : i32
    %c0_i32_0 = arith.constant 0 : i32
    return %arg0, %c0_i32 : i32, i32
  }
  func.func @transform_1(%arg0: i32) -> (i32, i32) {
    %c0_i32 = arith.constant 0 : i32
    %c0_i32_0 = arith.constant 0 : i32
    return %arg0, %c0_i32 : i32, i32
  }
  func.func @transform_2(%arg0: i32) -> (i32, i32) {
    %c0_i32 = arith.constant 0 : i32
    %c0_i32_0 = arith.constant 0 : i32
    return %arg0, %c0_i32 : i32, i32
  }
  func.func @transform_3(%arg0: i32) -> (i32, i32) {
    %c0_i32 = arith.constant 0 : i32
    %c0_i32_0 = arith.constant 0 : i32
    %c0_i32_1 = arith.constant 0 : i32
    return %c0_i32, %c0_i32_0 : i32, i32
  }
  func.func @transform_4(%arg0: i32) -> (i32, i32) {
    %c0_i32 = arith.constant 0 : i32
    %c0_i32_0 = arith.constant 0 : i32
    %c0_i32_1 = arith.constant 0 : i32
    return %c0_i32, %c0_i32_0 : i32, i32
  }
  func.func @transform_5(%arg0: i32) -> (i32, i32) {
    %c0_i32 = arith.constant 0 : i32
    %c0_i32_0 = arith.constant 0 : i32
    %c0_i32_1 = arith.constant 0 : i32
    return %c0_i32, %c0_i32_0 : i32, i32
  }
  func.func @transform_6(%arg0: i32) -> (i32, i32) {
    %c0_i32 = arith.constant 0 : i32
    %c0_i32_0 = arith.constant 0 : i32
    %c0_i32_1 = arith.constant 0 : i32
    return %c0_i32, %c0_i32_0 : i32, i32
  }
  func.func @transform_7(%arg0: i32) -> (i32, i32) {
    %c0_i32 = arith.constant 0 : i32
    %c0_i32_0 = arith.constant 0 : i32
    return %arg0, %c0_i32 : i32, i32
  }
  func.func @transform_8(%arg0: i32) -> (i32, i32) {
    %c0_i32 = arith.constant 0 : i32
    %c0_i32_0 = arith.constant 0 : i32
    return %arg0, %c0_i32 : i32, i32
  }
}

</mosaic_0001>

<llo_original>
// kernel: tpu_custom_call.1
$region0: #{tpu_custom_call.1}
  #allocation0 [shape = 'u32[]', space=smem, size = 0x4, offset = 0x4, fixed_abs, tag = 'smem constant byte address 0x4 - core index']
  #allocation1 [shape = 'u32[144,128]{1,0:T(1,128)}', space=vmem, size = 0x12000, scoped, tag = 'internal scratch']
  %s0 = inlined_call_operand.hbm [shape: f32[2,32], index: 0, kind: input, shape index: {}]
  %s1 = inlined_call_operand.hbm [shape: f32[16,32], index: 1, kind: input, shape index: {}]
  %s2 = inlined_call_operand.vmem [shape: f32[16,1], index: 2, kind: input, shape index: {}]
  %s3 = inlined_call_operand.hbm [shape: f32[32,32], index: 3, kind: input, shape index: {}]
  %s4 = inlined_call_operand.vmem [shape: f32[32,64], index: 4, kind: input, shape index: {}]
  %s5 = inlined_call_operand.hbm [shape: f32[32,32], index: 5, kind: input, shape index: {}]
  %s6 = inlined_call_operand.vmem [shape: f32[1,32], index: 6, kind: input, shape index: {}]
  %s7 = inlined_call_operand.hbm [shape: f32[2,32], index: 7, kind: output, shape index: {0}]
  %s8 = inlined_call_operand.hbm [shape: f32[2,8], index: 8, kind: output, shape index: {1}]
  %9 = xla_tuple %s7, %s8
  %s10 = sld [smem:[#allocation0]]
  $region62: #{tpu_custom_call.1} parent=0
    _
  %s12 = ssub.s32 1, %s10
  %s13 = scalar_select 0, %s12, %s10
  $region1: #{tpu_custom_call.1} parent=0
    #allocation2 [shape = 'u8[1024]{0}', space=vmem, size = 0x400, scoped, tag = 'input window, operand 0, single buffered']
    #allocation3 [shape = 's32[1]{0}', space=sflag, size = 0x4, scoped, tag = 'scoped memory for tpu_custom_call.1']
    #allocation4 [shape = 's32[1]{0}', space=sflag, size = 0x4, scoped, tag = 'scoped memory for tpu_custom_call.1']
    #allocation5 [shape = 'u8[8192]{0}', space=vmem, size = 0x2000, scoped, tag = 'input window, operand 1, single buffered']
    #allocation6 [shape = 's32[1]{0}', space=sflag, size = 0x4, scoped, tag = 'scoped memory for tpu_custom_call.1']
    #allocation7 [shape = 'u8[16384]{0}', space=vmem, size = 0x4000, scoped, tag = 'input window, operand 3, single buffered']
    #allocation8 [shape = 'u8[16384]{0}', space=vmem, size = 0x4000, scoped, tag = 'input window, operand 5, single buffered']
    #allocation9 [shape = 's32[1]{0}', space=sflag, size = 0x4, scoped, tag = 'scoped memory for tpu_custom_call.1']
    #allocation10 [shape = 'u8[1024]{0}', space=vmem, size = 0x400, scoped, tag = 'output window, operand 0, single buffered']
    #allocation11 [shape = 'u8[1024]{0}', space=vmem, size = 0x400, scoped, tag = 'output window, operand 1, single buffered']
    #allocation12 [shape = 's32[1]{0}', space=sflag, size = 0x4, scoped, tag = 'scoped memory for tpu_custom_call.1']
    %14 = vsyncpa [#allocation3], 0
    %15 = vsyncpa [#allocation6], 0
    %16 = vsyncpa [#allocation9], 0
    %17 = vsyncpa [#allocation4], 0
    %18 = vsyncpa [#allocation12], 0
    // Predicated region
    $region2: #{tpu_custom_call.1} parent=1 // pred_check
      _
    $region3: #{tpu_custom_call.1} parent=1 // pred_check_branch
      %20 = sbr.rel (0) target = $region5
    $region4: #{tpu_custom_call.1} parent=1 // pred_region
      %s22 = ssub.s32 32, 32
      %23 = vsyncadd [#allocation3], %s22
      %s25 = sshll.u32 [#allocation2], 4
      %s26 = int_to_ptr.vmem [resolvable:$true] %s25
      %28 = dma.hbm_to_vmem [thread:$0]  %s0, 32, %s26, [#allocation3]
    $region5: #{tpu_custom_call.1} parent=1 // pred_fallthru
      _
    // Predicated region
    $region6: #{tpu_custom_call.1} parent=1 // pred_check
      _
    $region7: #{tpu_custom_call.1} parent=1 // pred_check_branch
      %30 = sbr.rel (0) target = $region9
    $region8: #{tpu_custom_call.1} parent=1 // pred_region
      %s32 = ssub.s32 256, 256
      %33 = vsyncadd [#allocation6], %s32
      %s34 = sshll.u32 [#allocation5], 4
      %s35 = int_to_ptr.vmem [resolvable:$true] %s34
      %40 = dma.hbm_to_vmem [thread:$0]  %s1, 256, %s35, [#allocation6], 128, 128, 8
    $region9: #{tpu_custom_call.1} parent=1 // pred_fallthru
      _
    // Predicated region
    $region10: #{tpu_custom_call.1} parent=1 // pred_check
      _
    $region11: #{tpu_custom_call.1} parent=1 // pred_check_branch
      %42 = sbr.rel (0) target = $region13
    $region12: #{tpu_custom_call.1} parent=1 // pred_region
      _
    $region13: #{tpu_custom_call.1} parent=1 // pred_fallthru
      _
    // Predicated region
    $region14: #{tpu_custom_call.1} parent=1 // pred_check
      _
    $region15: #{tpu_custom_call.1} parent=1 // pred_check_branch
      %44 = sbr.rel (0) target = $region17
    $region16: #{tpu_custom_call.1} parent=1 // pred_region
      %s46 = ssub.s32 512, 512
      %47 = vsyncadd [#allocation6], %s46
      %s48 = sshll.u32 [#allocation7], 4
      %s49 = int_to_ptr.vmem [resolvable:$true] %s48
      %54 = dma.hbm_to_vmem [thread:$0]  %s3, 512, %s49, [#allocation6], 128, 128, 8
    $region17: #{tpu_custom_call.1} parent=1 // pred_fallthru
      _
    // Predicated region
    $region18: #{tpu_custom_call.1} parent=1 // pred_check
      _
    $region19: #{tpu_custom_call.1} parent=1 // pred_check_branch
      %56 = sbr.rel (0) target = $region21
    $region20: #{tpu_custom_call.1} parent=1 // pred_region
      _
    $region21: #{tpu_custom_call.1} parent=1 // pred_fallthru
      _
    // Predicated region
    $region22: #{tpu_custom_call.1} parent=1 // pred_check
      _
    $region23: #{tpu_custom_call.1} parent=1 // pred_check_branch
      %58 = sbr.rel (0) target = $region25
    $region24: #{tpu_custom_call.1} parent=1 // pred_region
      %s60 = ssub.s32 512, 512
      %61 = vsyncadd [#allocation9], %s60
      %s62 = sshll.u32 [#allocation8], 4
      %s63 = int_to_ptr.vmem [resolvable:$true] %s62
      %68 = dma.hbm_to_vmem [thread:$0]  %s5, 512, %s63, [#allocation9], 128, 128, 8
    $region25: #{tpu_custom_call.1} parent=1 // pred_fallthru
      _
    // Predicated region
    $region26: #{tpu_custom_call.1} parent=1 // pred_check
      _
    $region27: #{tpu_custom_call.1} parent=1 // pred_check_branch
      %70 = sbr.rel (0) target = $region29
    $region28: #{tpu_custom_call.1} parent=1 // pred_region
      _
    $region29: #{tpu_custom_call.1} parent=1 // pred_fallthru
      _
    // Predicated region
    $region30: #{tpu_custom_call.1} parent=1 // pred_check
      _
    $region31: #{tpu_custom_call.1} parent=1 // pred_check_branch
      %72 = sbr.rel (0) target = $region33
    $region32: #{tpu_custom_call.1} parent=1 // pred_region
      %73 = dma.done [#allocation3], 32
    $region33: #{tpu_custom_call.1} parent=1 // pred_fallthru
      _
    // Predicated region
    $region34: #{tpu_custom_call.1} parent=1 // pred_check
      _
    $region35: #{tpu_custom_call.1} parent=1 // pred_check_branch
      %75 = sbr.rel (0) target = $region37
    $region36: #{tpu_custom_call.1} parent=1 // pred_region
      %76 = dma.done [#allocation6], 256
    $region37: #{tpu_custom_call.1} parent=1 // pred_fallthru
      _
    // Predicated region
    $region38: #{tpu_custom_call.1} parent=1 // pred_check
      _
    $region39: #{tpu_custom_call.1} parent=1 // pred_check_branch
      %78 = sbr.rel (0) target = $region41
    $region40: #{tpu_custom_call.1} parent=1 // pred_region
      %79 = dma.done [#allocation6], 512
    $region41: #{tpu_custom_call.1} parent=1 // pred_fallthru
      _
    // Predicated region
    $region42: #{tpu_custom_call.1} parent=1 // pred_check
      _
    $region43: #{tpu_custom_call.1} parent=1 // pred_check_branch
      %81 = sbr.rel (0) target = $region45
    $region44: #{tpu_custom_call.1} parent=1 // pred_region
      %82 = dma.done [#allocation9], 512
    $region45: #{tpu_custom_call.1} parent=1 // pred_fallthru
      _
    %v83 = vlaneseq
    %v84 = vshrl.u32 %v83, 7
    %v85 = vadd.s32 %v84, 8
    %v86 = vadd.s32 %v84, 16
    %v87 = vadd.s32 %v84, 24
    %v88 = vlaneseq
    %v89 = vand.u32 %v88, 127
    %v90 = vmul.u32 %v89, 4
    %vm91 = vcmp.ge.s32.totalorder %v84, %v90
    %vm92 = vcmp.ge.s32.totalorder %v85, %v90
    %vm93 = vcmp.ge.s32.totalorder %v86, %v90
    %vm94 = vcmp.ge.s32.totalorder %v87, %v90
    %v95 = vadd.s32 %v90, 4
    %vm96 = vcmp.lt.s32.totalorder %v84, %v95
    %vm97 = vcmp.lt.s32.totalorder %v85, %v95
    %vm98 = vcmp.lt.s32.totalorder %v86, %v95
    %vm99 = vcmp.lt.s32.totalorder %v87, %v95
    %vm100 = vmand %vm91, %vm96
    %vm101 = vmand %vm92, %vm97
    %vm102 = vmand %vm93, %vm98
    %vm103 = vmand %vm94, %vm99
    %v104 = vsel %vm100, 1, 0
    %v105 = vsel %vm101, 1, 0
    %v106 = vsel %vm102, 1, 0
    %v107 = vsel %vm103, 1, 0
    %v108 = vcvt.s32.f32 %v104
    %v109 = vcvt.s32.f32 %v105
    %v110 = vcvt.s32.f32 %v106
    %v111 = vcvt.s32.f32 %v107
    %v112 = vmul.u32 %v84, 4
    %vm113 = vcmp.ge.s32.totalorder %v89, %v112
    %v114 = vadd.s32 %v112, 4
    %vm115 = vcmp.lt.s32.totalorder %v89, %v114
    %vm116 = vmand %vm113, %vm115
    %v117 = vsel %vm116, 1, 0
    %v118 = vcvt.s32.f32 %v117
    %v119 = vmul.u32 %v89, 8
    %vm120 = vcmp.ge.s32.totalorder %v84, %v119
    %vm121 = vcmp.ge.s32.totalorder %v85, %v119
    %v122 = vadd.s32 %v119, 8
    %vm123 = vcmp.lt.s32.totalorder %v84, %v122
    %vm124 = vcmp.lt.s32.totalorder %v85, %v122
    %vm125 = vmand %vm120, %vm123
    %vm126 = vmand %vm121, %vm124
    %v127 = vsel %vm125, 1, 0
    %v128 = vsel %vm126, 1, 0
    %v129 = vcvt.s32.f32 %v127
    %v130 = vcvt.s32.f32 %v128
    %v131 = vmul.u32 %v84, 8
    %vm132 = vcmp.ge.s32.totalorder %v89, %v131
    %v133 = vadd.s32 %v131, 8
    %vm134 = vcmp.lt.s32.totalorder %v89, %v133
    %vm135 = vmand %vm132, %vm134
    %v136 = vsel %vm135, 1, 0
    %v137 = vcvt.s32.f32 %v136
    %v138 = vld [vmem:[#allocation2] sm:$0x3]
    %v139 = vld [vmem:[#allocation7] sm:$0xff]
    %v140 = vld [vmem:[#allocation7 + $0x8] sm:$0xff]
    %v141 = vld [vmem:[#allocation7 + $0x10] sm:$0xff]
    %v142 = vld [vmem:[#allocation7 + $0x18] sm:$0xff]
    %vm143 = vcmask 261120
    %v145 = vsel %vm143, %v138, 0
    %147 = vmatprep.subr.mxu0 0.0
    %148 = vmatpush1.msra.mxu0 %v139
    %149 = vmatprep.subr.mxu0 0.0
    %150 = vmatpush1.msra.mxu0 %v140
    %151 = vmatprep.subr.mxu0 0.0
    %152 = vmatpush1.msra.mxu0 %v141
    %153 = vmatprep.subr.mxu0 0.0
    %154 = vmatpush1.msra.mxu0 %v142
    %155 = vmatprep.subr.mxu0 0.0
    %156 = vmatpush1.msra.mxu0 0.0
    %157 = vmatprep.subr.mxu0 0.0
    %158 = vmatpush1.msra.mxu0 0.0
    %159 = vmatprep.subr.mxu0 0.0
    %160 = vmatpush1.msra.mxu0 0.0
    %161 = vmatprep.subr.mxu0 0.0
    %162 = vmatpush1.msra.mxu0 0.0
    %163 = vmatprep.subr.mxu0 0.0
    %164 = vmatpush1.msra.mxu0 0.0
    %165 = vmatprep.subr.mxu0 0.0
    %166 = vmatpush1.msra.mxu0 0.0
    %167 = vmatprep.subr.mxu0 0.0
    %168 = vmatpush1.msra.mxu0 0.0
    %169 = vmatprep.subr.mxu0 0.0
    %170 = vmatpush1.msra.mxu0 0.0
    %171 = vmatprep.subr.mxu0 0.0
    %172 = vmatpush1.msra.mxu0 0.0
    %173 = vmatprep.subr.mxu0 0.0
    %174 = vmatpush1.msra.mxu0 0.0
    %175 = vmatprep.subr.mxu0 0.0
    %176 = vmatpush1.msra.mxu0 0.0
    %177 = vmatprep.subr.mxu0 0.0
    %178 = vmatpush1.msra.mxu0 0.0
    %179 = vmatprep.subr.mxu0 0.0
    %180 = vmatpush1.msra.mxu0 0.0
    %181 = vmatprep.subr.mxu0 0.0
    %182 = vmatpush1.msra.mxu0 0.0
    %183 = vmatprep.subr.mxu0 0.0
    %184 = vmatpush1.msra.mxu0 0.0
    %185 = vmatprep.subr.mxu0 0.0
    %186 = vmatpush1.msra.mxu0 0.0
    %187 = vmatprep.subr.mxu0 0.0
    %188 = vmatpush1.msra.mxu0 0.0
    %189 = vmatprep.subr.mxu0 0.0
    %190 = vmatpush1.msra.mxu0 0.0
    %191 = vmatprep.subr.mxu0 0.0
    %192 = vmatpush1.msra.mxu0 0.0
    %193 = vmatprep.subr.mxu0 0.0
    %194 = vmatpush1.msra.mxu0 0.0
    %195 = vmatprep.subr.mxu0 0.0
    %196 = vmatpush1.msra.mxu0 0.0
    %197 = vmatprep.subr.mxu0 0.0
    %198 = vmatpush1.msra.mxu0 0.0
    %199 = vmatprep.subr.mxu0 0.0
    %200 = vmatpush1.msra.mxu0 0.0
    %201 = vmatprep.subr.mxu0 0.0
    %202 = vmatpush1.msra.mxu0 0.0
    %203 = vmatprep.subr.mxu0 0.0
    %204 = vmatpush1.msra.mxu0 0.0
    %205 = vmatprep.subr.mxu0 0.0
    %206 = vmatpush1.msra.mxu0 0.0
    %207 = vmatprep.subr.mxu0 0.0
    %208 = vmatpush1.msra.mxu0 0.0
    %209 = vmatprep.subr.mxu0 0.0
    %210 = vmatpush1.msra.mxu0 0.0
    %211 = vmatprep.mubr.f32.mxu0 0.0
    %212 = vmatmul.mubr.f32.gmra.mrb[0].mxu0 %v145
    %v213 = vpop.f32.mrb[0].mxu0
    %v214 = vadd.f32 0.0, %v213
    %v215 = vpop.f32.mrb[0].mxu0
    %216 = vdwg.mxu0
    %v217 = vld [vmem:[#allocation5] sm:$0xff]
    %v218 = vld [vmem:[#allocation5 + $0x8] sm:$0xff]
    %v219 = vld [vmem:[%s4] sm:$0xff]
    %v220 = vld [vmem:[%s4 + $0x8] sm:$0xff]
    %v221 = vld [vmem:[%s4 + $0x10] sm:$0xff]
    %v222 = vld [vmem:[%s4 + $0x18] sm:$0xff]
    %v224 = vsel %vm143, %v217, 0
    %v227 = vsel %vm143, %v218, 0
    %229 = vmatprep.subr.mxu0 0.0
    %230 = vmatpush1.msra.mxu0 %v219
    %231 = vmatprep.subr.mxu0 0.0
    %232 = vmatpush1.msra.mxu0 %v220
    %233 = vmatprep.subr.mxu0 0.0
    %234 = vmatpush1.msra.mxu0 %v221
    %235 = vmatprep.subr.mxu0 0.0
    %236 = vmatpush1.msra.mxu0 %v222
    %237 = vmatprep.subr.mxu0 0.0
    %238 = vmatpush1.msra.mxu0 0.0
    %239 = vmatprep.subr.mxu0 0.0
    %240 = vmatpush1.msra.mxu0 0.0
    %241 = vmatprep.subr.mxu0 0.0
    %242 = vmatpush1.msra.mxu0 0.0
    %243 = vmatprep.subr.mxu0 0.0
    %244 = vmatpush1.msra.mxu0 0.0
    %245 = vmatprep.subr.mxu0 0.0
    %246 = vmatpush1.msra.mxu0 0.0
    %247 = vmatprep.subr.mxu0 0.0
    %248 = vmatpush1.msra.mxu0 0.0
    %249 = vmatprep.subr.mxu0 0.0
    %250 = vmatpush1.msra.mxu0 0.0
    %251 = vmatprep.subr.mxu0 0.0
    %252 = vmatpush1.msra.mxu0 0.0
    %253 = vmatprep.subr.mxu0 0.0
    %254 = vmatpush1.msra.mxu0 0.0
    %255 = vmatprep.subr.mxu0 0.0
    %256 = vmatpush1.msra.mxu0 0.0
    %257 = vmatprep.subr.mxu0 0.0
    %258 = vmatpush1.msra.mxu0 0.0
    %259 = vmatprep.subr.mxu0 0.0
    %260 = vmatpush1.msra.mxu0 0.0
    %261 = vmatprep.subr.mxu0 0.0
    %262 = vmatpush1.msra.mxu0 0.0
    %263 = vmatprep.subr.mxu0 0.0
    %264 = vmatpush1.msra.mxu0 0.0
    %265 = vmatprep.subr.mxu0 0.0
    %266 = vmatpush1.msra.mxu0 0.0
    %267 = vmatprep.subr.mxu0 0.0
    %268 = vmatpush1.msra.mxu0 0.0
    %269 = vmatprep.subr.mxu0 0.0
    %270 = vmatpush1.msra.mxu0 0.0
    %271 = vmatprep.subr.mxu0 0.0
    %272 = vmatpush1.msra.mxu0 0.0
    %273 = vmatprep.subr.mxu0 0.0
    %274 = vmatpush1.msra.mxu0 0.0
    %275 = vmatprep.subr.mxu0 0.0
    %276 = vmatpush1.msra.mxu0 0.0
    %277 = vmatprep.subr.mxu0 0.0
    %278 = vmatpush1.msra.mxu0 0.0
    %279 = vmatprep.subr.mxu0 0.0
    %280 = vmatpush1.msra.mxu0 0.0
    %281 = vmatprep.subr.mxu0 0.0
    %282 = vmatpush1.msra.mxu0 0.0
    %283 = vmatprep.subr.mxu0 0.0
    %284 = vmatpush1.msra.mxu0 0.0
    %285 = vmatprep.subr.mxu0 0.0
    %286 = vmatpush1.msra.mxu0 0.0
    %287 = vmatprep.subr.mxu0 0.0
    %288 = vmatpush1.msra.mxu0 0.0
    %289 = vmatprep.subr.mxu0 0.0
    %290 = vmatpush1.msra.mxu0 0.0
    %291 = vmatprep.subr.mxu0 0.0
    %292 = vmatpush1.msra.mxu0 0.0
    %293 = vmatprep.mubr.f32.mxu0 0.0
    %294 = vmatmul.mubr.f32.gmra.mrb[0].mxu0 %v224
    %v295 = vpop.f32.mrb[0].mxu0
    %v296 = vadd.f32 0.0, %v295
    %v297 = vpop.f32.mrb[0].mxu0
    %298 = vmatprep.mubr.f32.mxu0 0.0
    %299 = vmatmul.mubr.f32.gmra.mrb[0].mxu0 %v227
    %v300 = vpop.f32.mrb[0].mxu0
    %v301 = vadd.f32 0.0, %v300
    %v302 = vpop.f32.mrb[0].mxu0
    %303 = vdwg.mxu0
    %vm304 = vcmask 15360
    %v306 = vsel %vm304, %v129, 0
    %v309 = vsel %vm304, %v130, 0
    %vm311 = vcmask 1041408
    %v313 = vsel %vm311, %v214, 0
    %315 = vmatprep.subr.mxu0 0.0
    %316 = vmatpush1.msra.mxu0 %v313
    %317 = vmatprep.subr.mxu0 0.0
    %318 = vmatpush1.msra.mxu0 0.0
    %319 = vmatprep.subr.mxu0 0.0
    %320 = vmatpush1.msra.mxu0 0.0
    %321 = vmatprep.subr.mxu0 0.0
    %322 = vmatpush1.msra.mxu0 0.0
    %323 = vmatprep.subr.mxu0 0.0
    %324 = vmatpush1.msra.mxu0 0.0
    %325 = vmatprep.subr.mxu0 0.0
    %326 = vmatpush1.msra.mxu0 0.0
    %327 = vmatprep.subr.mxu0 0.0
    %328 = vmatpush1.msra.mxu0 0.0
    %329 = vmatprep.subr.mxu0 0.0
    %330 = vmatpush1.msra.mxu0 0.0
    %331 = vmatprep.subr.mxu0 0.0
    %332 = vmatpush1.msra.mxu0 0.0
    %333 = vmatprep.subr.mxu0 0.0
    %334 = vmatpush1.msra.mxu0 0.0
    %335 = vmatprep.subr.mxu0 0.0
    %336 = vmatpush1.msra.mxu0 0.0
    %337 = vmatprep.subr.mxu0 0.0
    %338 = vmatpush1.msra.mxu0 0.0
    %339 = vmatprep.subr.mxu0 0.0
    %340 = vmatpush1.msra.mxu0 0.0
    %341 = vmatprep.subr.mxu0 0.0
    %342 = vmatpush1.msra.mxu0 0.0
    %343 = vmatprep.subr.mxu0 0.0
    %344 = vmatpush1.msra.mxu0 0.0
    %345 = vmatprep.subr.mxu0 0.0
    %346 = vmatpush1.msra.mxu0 0.0
    %347 = vmatprep.subr.mxu0 0.0
    %348 = vmatpush1.msra.mxu0 0.0
    %349 = vmatprep.subr.mxu0 0.0
    %350 = vmatpush1.msra.mxu0 0.0
    %351 = vmatprep.subr.mxu0 0.0
    %352 = vmatpush1.msra.mxu0 0.0
    %353 = vmatprep.subr.mxu0 0.0
    %354 = vmatpush1.msra.mxu0 0.0
    %355 = vmatprep.subr.mxu0 0.0
    %356 = vmatpush1.msra.mxu0 0.0
    %357 = vmatprep.subr.mxu0 0.0
    %358 = vmatpush1.msra.mxu0 0.0
    %359 = vmatprep.subr.mxu0 0.0
    %360 = vmatpush1.msra.mxu0 0.0
    %361 = vmatprep.subr.mxu0 0.0
    %362 = vmatpush1.msra.mxu0 0.0
    %363 = vmatprep.subr.mxu0 0.0
    %364 = vmatpush1.msra.mxu0 0.0
    %365 = vmatprep.subr.mxu0 0.0
    %366 = vmatpush1.msra.mxu0 0.0
    %367 = vmatprep.subr.mxu0 0.0
    %368 = vmatpush1.msra.mxu0 0.0
    %369 = vmatprep.subr.mxu0 0.0
    %370 = vmatpush1.msra.mxu0 0.0
    %371 = vmatprep.subr.mxu0 0.0
    %372 = vmatpush1.msra.mxu0 0.0
    %373 = vmatprep.subr.mxu0 0.0
    %374 = vmatpush1.msra.mxu0 0.0
    %375 = vmatprep.subr.mxu0 0.0
    %376 = vmatpush1.msra.mxu0 0.0
    %377 = vmatprep.subr.mxu0 0.0
    %378 = vmatpush1.msra.mxu0 0.0
    %379 = vmatprep.mubr.f32.mxu0 0.0
    %380 = vmatmul.mubr.f32.gmra.mrb[0].mxu0 %v306
    %v381 = vpop.f32.mrb[0].mxu0
    %v382 = vadd.f32 0.0, %v381
    %v383 = vpop.f32.mrb[0].mxu0
    %384 = vmatprep.mubr.f32.mxu0 0.0
    %385 = vmatmul.mubr.f32.gmra.mrb[0].mxu0 %v309
    %v386 = vpop.f32.mrb[0].mxu0
    %v387 = vadd.f32 0.0, %v386
    %v388 = vpop.f32.mrb[0].mxu0
    %389 = vdwg.mxu0
    %v390 = vmul.f32 %v296, %v382
    %v391 = vmul.f32 %v301, %v387
    %v393 = vsel %vm143, %v390, 0
    %v396 = vsel %vm143, %v391, 0
    %398 = vmatprep.subr.mxu0 0.0
    %399 = vmatpush1.msra.mxu0 %v108
    %400 = vmatprep.subr.mxu0 0.0
    %401 = vmatpush1.msra.mxu0 %v109
    %402 = vmatprep.subr.mxu0 0.0
    %403 = vmatpush1.msra.mxu0 %v110
    %404 = vmatprep.subr.mxu0 0.0
    %405 = vmatpush1.msra.mxu0 %v111
    %406 = vmatprep.subr.mxu0 0.0
    %407 = vmatpush1.msra.mxu0 0.0
    %408 = vmatprep.subr.mxu0 0.0
    %409 = vmatpush1.msra.mxu0 0.0
    %410 = vmatprep.subr.mxu0 0.0
    %411 = vmatpush1.msra.mxu0 0.0
    %412 = vmatprep.subr.mxu0 0.0
    %413 = vmatpush1.msra.mxu0 0.0
    %414 = vmatprep.subr.mxu0 0.0
    %415 = vmatpush1.msra.mxu0 0.0
    %416 = vmatprep.subr.mxu0 0.0
    %417 = vmatpush1.msra.mxu0 0.0
    %418 = vmatprep.subr.mxu0 0.0
    %419 = vmatpush1.msra.mxu0 0.0
    %420 = vmatprep.subr.mxu0 0.0
    %421 = vmatpush1.msra.mxu0 0.0
    %422 = vmatprep.subr.mxu0 0.0
    %423 = vmatpush1.msra.mxu0 0.0
    %424 = vmatprep.subr.mxu0 0.0
    %425 = vmatpush1.msra.mxu0 0.0
    %426 = vmatprep.subr.mxu0 0.0
    %427 = vmatpush1.msra.mxu0 0.0
    %428 = vmatprep.subr.mxu0 0.0
    %429 = vmatpush1.msra.mxu0 0.0
    %430 = vmatprep.subr.mxu0 0.0
    %431 = vmatpush1.msra.mxu0 0.0
    %432 = vmatprep.subr.mxu0 0.0
    %433 = vmatpush1.msra.mxu0 0.0
    %434 = vmatprep.subr.mxu0 0.0
    %435 = vmatpush1.msra.mxu0 0.0
    %436 = vmatprep.subr.mxu0 0.0
    %437 = vmatpush1.msra.mxu0 0.0
    %438 = vmatprep.subr.mxu0 0.0
    %439 = vmatpush1.msra.mxu0 0.0
    %440 = vmatprep.subr.mxu0 0.0
    %441 = vmatpush1.msra.mxu0 0.0
    %442 = vmatprep.subr.mxu0 0.0
    %443 = vmatpush1.msra.mxu0 0.0
    %444 = vmatprep.subr.mxu0 0.0
    %445 = vmatpush1.msra.mxu0 0.0
    %446 = vmatprep.subr.mxu0 0.0
    %447 = vmatpush1.msra.mxu0 0.0
    %448 = vmatprep.subr.mxu0 0.0
    %449 = vmatpush1.msra.mxu0 0.0
    %450 = vmatprep.subr.mxu0 0.0
    %451 = vmatpush1.msra.mxu0 0.0
    %452 = vmatprep.subr.mxu0 0.0
    %453 = vmatpush1.msra.mxu0 0.0
    %454 = vmatprep.subr.mxu0 0.0
    %455 = vmatpush1.msra.mxu0 0.0
    %456 = vmatprep.subr.mxu0 0.0
    %457 = vmatpush1.msra.mxu0 0.0
    %458 = vmatprep.subr.mxu0 0.0
    %459 = vmatpush1.msra.mxu0 0.0
    %460 = vmatprep.subr.mxu0 0.0
    %461 = vmatpush1.msra.mxu0 0.0
    %462 = vmatprep.mubr.f32.mxu0 0.0
    %463 = vmatmul.mubr.f32.gmra.mrb[0].mxu0 %v393
    %v464 = vpop.f32.mrb[0].mxu0
    %v465 = vadd.f32 0.0, %v464
    %v466 = vpop.f32.mrb[0].mxu0
    %467 = vmatprep.mubr.f32.mxu0 0.0
    %468 = vmatmul.mubr.f32.gmra.mrb[0].mxu0 %v396
    %v469 = vpop.f32.mrb[0].mxu0
    %v470 = vadd.f32 0.0, %v469
    %v471 = vpop.f32.mrb[0].mxu0
    %472 = vdwg.mxu0
    %v473 = vmul.f32 %v465, 0.5
    %v474 = vmul.f32 %v470, 0.5
    %v475 = vld [vmem:[%s2] sm:$0xff]
    %v476 = vld [vmem:[%s2 + $0x8] sm:$0xff]
    %vm477 = vcmp.eq.f32.partialorder %v475, 0.0
    %vm478 = vcmp.eq.f32.partialorder %v476, 0.0
    %v479 = vsel %vm477, 1, 0
    %v480 = vsel %vm478, 1, 0
    %481 = vset.pattern.permute.xlu0 0
    %482 = vperm.xlu0 %481, %v479
    %v483 = vpop.permute.xlu0 %482
    %484 = vset.pattern.permute.xlu0 0
    %485 = vperm.xlu0 %484, %v480
    %v486 = vpop.permute.xlu0 %485
    %vm487 = vcmp.eq.s32.totalorder %v483, 1
    %vm488 = vcmp.eq.s32.totalorder %v486, 1
    %v489 = vsel %vm487, -1e+09, %v473
    %v490 = vsel %vm488, -1e+09, %v474
    %vm491 = vcmask 64512
    %v492 = vsel %vm491, %v489, -inf
    %v493 = vrot.slane %v492, 4
    %v494 = vmax.f32 %v492, %v493
    %v495 = vrot.slane %v494, 2
    %v496 = vmax.f32 %v494, %v495
    %v497 = vrot.slane %v496, 1
    %v498 = vmax.f32 %v496, %v497
    %499 = vset.pattern.permute.xlu0 0
    %500 = vperm.xlu0 %499, %v129
    %v501 = vpop.permute.xlu0 %500
    %503 = vset.pattern.permute.xlu0 0
    %504 = vperm.xlu0 %503, %v130
    %v505 = vpop.permute.xlu0 %504
    %v507 = vmul.f32 %v501, %v498
    %v508 = vmul.f32 %v505, %v498
    %v509 = vadd.f32 %v507, 0.0
    %v510 = vadd.f32 %v508, 0.0
    %v511 = vsel %vm491, %v490, -inf
    %v512 = vrot.slane %v511, 4
    %v513 = vmax.f32 %v511, %v512
    %v514 = vrot.slane %v513, 2
    %v515 = vmax.f32 %v513, %v514
    %v516 = vrot.slane %v515, 1
    %v517 = vmax.f32 %v515, %v516
    %518 = vset.pattern.permute.xlu0 1
    %519 = vperm.xlu0 %518, %v129
    %v520 = vpop.permute.xlu0 %519
    %522 = vset.pattern.permute.xlu0 1
    %523 = vperm.xlu0 %522, %v130
    %v524 = vpop.permute.xlu0 %523
    %v526 = vmul.f32 %v520, %v517
    %v527 = vmul.f32 %v524, %v517
    %v528 = vadd.f32 %v509, %v526
    %v529 = vadd.f32 %v510, %v527
    %v530 = vsub.f32 %v489, %v528
    %v531 = vsub.f32 %v490, %v529
    %v532 = vmul.f32 %v530, 1.442695
    %v533 = vpow.pop %v532
    %v534 = vmul.f32 %v531, 1.442695
    %v535 = vpow.pop %v534
    %vm536 = vcmask 130048
    %v538 = vsel %vm536, %v137, 0
    %540 = vmatprep.subr.mxu0 0.0
    %541 = vmatpush1.msra.mxu0 %v533
    %542 = vmatprep.subr.mxu0 0.0
    %543 = vmatpush1.msra.mxu0 %v535
    %544 = vmatprep.subr.mxu0 0.0
    %545 = vmatpush1.msra.mxu0 0.0
    %546 = vmatprep.subr.mxu0 0.0
    %547 = vmatpush1.msra.mxu0 0.0
    %548 = vmatprep.subr.mxu0 0.0
    %549 = vmatpush1.msra.mxu0 0.0
    %550 = vmatprep.subr.mxu0 0.0
    %551 = vmatpush1.msra.mxu0 0.0
    %552 = vmatprep.subr.mxu0 0.0
    %553 = vmatpush1.msra.mxu0 0.0
    %554 = vmatprep.subr.mxu0 0.0
    %555 = vmatpush1.msra.mxu0 0.0
    %556 = vmatprep.subr.mxu0 0.0
    %557 = vmatpush1.msra.mxu0 0.0
    %558 = vmatprep.subr.mxu0 0.0
    %559 = vmatpush1.msra.mxu0 0.0
    %560 = vmatprep.subr.mxu0 0.0
    %561 = vmatpush1.msra.mxu0 0.0
    %562 = vmatprep.subr.mxu0 0.0
    %563 = vmatpush1.msra.mxu0 0.0
    %564 = vmatprep.subr.mxu0 0.0
    %565 = vmatpush1.msra.mxu0 0.0
    %566 = vmatprep.subr.mxu0 0.0
    %567 = vmatpush1.msra.mxu0 0.0
    %568 = vmatprep.subr.mxu0 0.0
    %569 = vmatpush1.msra.mxu0 0.0
    %570 = vmatprep.subr.mxu0 0.0
    %571 = vmatpush1.msra.mxu0 0.0
    %572 = vmatprep.subr.mxu0 0.0
    %573 = vmatpush1.msra.mxu0 0.0
    %574 = vmatprep.subr.mxu0 0.0
    %575 = vmatpush1.msra.mxu0 0.0
    %576 = vmatprep.subr.mxu0 0.0
    %577 = vmatpush1.msra.mxu0 0.0
    %578 = vmatprep.subr.mxu0 0.0
    %579 = vmatpush1.msra.mxu0 0.0
    %580 = vmatprep.subr.mxu0 0.0
    %581 = vmatpush1.msra.mxu0 0.0
    %582 = vmatprep.subr.mxu0 0.0
    %583 = vmatpush1.msra.mxu0 0.0
    %584 = vmatprep.subr.mxu0 0.0
    %585 = vmatpush1.msra.mxu0 0.0
    %586 = vmatprep.subr.mxu0 0.0
    %587 = vmatpush1.msra.mxu0 0.0
    %588 = vmatprep.subr.mxu0 0.0
    %589 = vmatpush1.msra.mxu0 0.0
    %590 = vmatprep.subr.mxu0 0.0
    %591 = vmatpush1.msra.mxu0 0.0
    %592 = vmatprep.subr.mxu0 0.0
    %593 = vmatpush1.msra.mxu0 0.0
    %594 = vmatprep.subr.mxu0 0.0
    %595 = vmatpush1.msra.mxu0 0.0
    %596 = vmatprep.subr.mxu0 0.0
    %597 = vmatpush1.msra.mxu0 0.0
    %598 = vmatprep.subr.mxu0 0.0
    %599 = vmatpush1.msra.mxu0 0.0
    %600 = vmatprep.subr.mxu0 0.0
    %601 = vmatpush1.msra.mxu0 0.0
    %602 = vmatprep.subr.mxu0 0.0
    %603 = vmatpush1.msra.mxu0 0.0
    %604 = vmatprep.mubr.f32.mxu0 0.0
    %605 = vmatmul.mubr.f32.gmra.mrb[0].mxu0 %v538
    %v606 = vpop.f32.mrb[0].mxu0
    %v607 = vadd.f32 0.0, %v606
    %v608 = vpop.f32.mrb[0].mxu0
    %609 = vdwg.mxu0
    %v611 = vsel %vm311, %v607, 0
    %613 = vmatprep.subr.mxu0 0.0
    %614 = vmatpush1.msra.mxu0 %v611
    %615 = vmatprep.subr.mxu0 0.0
    %616 = vmatpush1.msra.mxu0 0.0
    %617 = vmatprep.subr.mxu0 0.0
    %618 = vmatpush1.msra.mxu0 0.0
    %619 = vmatprep.subr.mxu0 0.0
    %620 = vmatpush1.msra.mxu0 0.0
    %621 = vmatprep.subr.mxu0 0.0
    %622 = vmatpush1.msra.mxu0 0.0
    %623 = vmatprep.subr.mxu0 0.0
    %624 = vmatpush1.msra.mxu0 0.0
    %625 = vmatprep.subr.mxu0 0.0
    %626 = vmatpush1.msra.mxu0 0.0
    %627 = vmatprep.subr.mxu0 0.0
    %628 = vmatpush1.msra.mxu0 0.0
    %629 = vmatprep.subr.mxu0 0.0
    %630 = vmatpush1.msra.mxu0 0.0
    %631 = vmatprep.subr.mxu0 0.0
    %632 = vmatpush1.msra.mxu0 0.0
    %633 = vmatprep.subr.mxu0 0.0
    %634 = vmatpush1.msra.mxu0 0.0
    %635 = vmatprep.subr.mxu0 0.0
    %636 = vmatpush1.msra.mxu0 0.0
    %637 = vmatprep.subr.mxu0 0.0
    %638 = vmatpush1.msra.mxu0 0.0
    %639 = vmatprep.subr.mxu0 0.0
    %640 = vmatpush1.msra.mxu0 0.0
    %641 = vmatprep.subr.mxu0 0.0
    %642 = vmatpush1.msra.mxu0 0.0
    %643 = vmatprep.subr.mxu0 0.0
    %644 = vmatpush1.msra.mxu0 0.0
    %645 = vmatprep.subr.mxu0 0.0
    %646 = vmatpush1.msra.mxu0 0.0
    %647 = vmatprep.subr.mxu0 0.0
    %648 = vmatpush1.msra.mxu0 0.0
    %649 = vmatprep.subr.mxu0 0.0
    %650 = vmatpush1.msra.mxu0 0.0
    %651 = vmatprep.subr.mxu0 0.0
    %652 = vmatpush1.msra.mxu0 0.0
    %653 = vmatprep.subr.mxu0 0.0
    %654 = vmatpush1.msra.mxu0 0.0
    %655 = vmatprep.subr.mxu0 0.0
    %656 = vmatpush1.msra.mxu0 0.0
    %657 = vmatprep.subr.mxu0 0.0
    %658 = vmatpush1.msra.mxu0 0.0
    %659 = vmatprep.subr.mxu0 0.0
    %660 = vmatpush1.msra.mxu0 0.0
    %661 = vmatprep.subr.mxu0 0.0
    %662 = vmatpush1.msra.mxu0 0.0
    %663 = vmatprep.subr.mxu0 0.0
    %664 = vmatpush1.msra.mxu0 0.0
    %665 = vmatprep.subr.mxu0 0.0
    %666 = vmatpush1.msra.mxu0 0.0
    %667 = vmatprep.subr.mxu0 0.0
    %668 = vmatpush1.msra.mxu0 0.0
    %669 = vmatprep.subr.mxu0 0.0
    %670 = vmatpush1.msra.mxu0 0.0
    %671 = vmatprep.subr.mxu0 0.0
    %672 = vmatpush1.msra.mxu0 0.0
    %673 = vmatprep.subr.mxu0 0.0
    %674 = vmatpush1.msra.mxu0 0.0
    %675 = vmatprep.subr.mxu0 0.0
    %676 = vmatpush1.msra.mxu0 0.0
    %677 = vmatprep.mubr.f32.mxu0 0.0
    %678 = vmatmul.mubr.f32.gmra.mrb[0].mxu0 %v306
    %v679 = vpop.f32.mrb[0].mxu0
    %v680 = vadd.f32 0.0, %v679
    %v681 = vpop.f32.mrb[0].mxu0
    %682 = vmatprep.mubr.f32.mxu0 0.0
    %683 = vmatmul.mubr.f32.gmra.mrb[0].mxu0 %v309
    %v684 = vpop.f32.mrb[0].mxu0
    %v685 = vadd.f32 0.0, %v684
    %v686 = vpop.f32.mrb[0].mxu0
    %687 = vdwg.mxu0
    %v688 = vrcp.pop %v680
    %v689 = vmul.f32 %v533, %v688
    %v690 = vrcp.pop %v685
    %v691 = vmul.f32 %v535, %v690
    %692 = vxpose.xlu0.b32.start [1/16] %v689, 128
    %693 = vxpose.xlu0.b32.cont [2/16] 0.0, 128
    %694 = vxpose.xlu0.b32.cont [3/16] 0.0, 128
    %695 = vxpose.xlu0.b32.cont [4/16] 0.0, 128
    %696 = vxpose.xlu0.b32.cont [5/16] 0.0, 128
    %697 = vxpose.xlu0.b32.cont [6/16] 0.0, 128
    %698 = vxpose.xlu0.b32.cont [7/16] 0.0, 128
    %699 = vxpose.xlu0.b32.cont [8/16] 0.0, 128
    %700 = vxpose.xlu0.b32.cont [9/16] 0.0, 128
    %701 = vxpose.xlu0.b32.cont [10/16] 0.0, 128
    %702 = vxpose.xlu0.b32.cont [11/16] 0.0, 128
    %703 = vxpose.xlu0.b32.cont [12/16] 0.0, 128
    %704 = vxpose.xlu0.b32.cont [13/16] 0.0, 128
    %705 = vxpose.xlu0.b32.cont [14/16] 0.0, 128
    %706 = vxpose.xlu0.b32.cont [15/16] 0.0, 128
    %707 = vxpose.xlu0.b32.end [16/16] 0.0, 128
    %v708 = vpop.trf.xlu0
    %v709 = vpop.trf.xlu0
    %v710 = vpop.trf.xlu0
    %v711 = vpop.trf.xlu0
    %v712 = vpop.trf.xlu0
    %v713 = vpop.trf.xlu0
    %v714 = vpop.trf.xlu0
    %v715 = vpop.trf.xlu0
    %v716 = vpop.trf.xlu0
    %v717 = vpop.trf.xlu0
    %v718 = vpop.trf.xlu0
    %v719 = vpop.trf.xlu0
    %v720 = vpop.trf.xlu0
    %v721 = vpop.trf.xlu0
    %v722 = vpop.trf.xlu0
    %v723 = vpop.trf.xlu0
    %v724 = vsel %vm491, %v708, 0.0
    %v725 = vrot.slane %v724, 4
    %v726 = vadd.f32 %v724, %v725
    %v727 = vrot.slane %v726, 2
    %v728 = vadd.f32 %v726, %v727
    %v729 = vrot.slane %v728, 1
    %v730 = vadd.f32 %v728, %v729
    %v731 = vrcp.pop 8.0
    %v732 = vmul.f32 %v730, %v731
    %vm733 = vcmask 57344
    %734 = vst.msk [vmem:[#allocation11] sm:$0x1] %vm733, %v732
    %735 = vxpose.xlu0.b32.start [1/16] %v691, 128
    %736 = vxpose.xlu0.b32.cont [2/16] 0.0, 128
    %737 = vxpose.xlu0.b32.cont [3/16] 0.0, 128
    %738 = vxpose.xlu0.b32.cont [4/16] 0.0, 128
    %739 = vxpose.xlu0.b32.cont [5/16] 0.0, 128
    %740 = vxpose.xlu0.b32.cont [6/16] 0.0, 128
    %741 = vxpose.xlu0.b32.cont [7/16] 0.0, 128
    %742 = vxpose.xlu0.b32.cont [8/16] 0.0, 128
    %743 = vxpose.xlu0.b32.cont [9/16] 0.0, 128
    %744 = vxpose.xlu0.b32.cont [10/16] 0.0, 128
    %745 = vxpose.xlu0.b32.cont [11/16] 0.0, 128
    %746 = vxpose.xlu0.b32.cont [12/16] 0.0, 128
    %747 = vxpose.xlu0.b32.cont [13/16] 0.0, 128
    %748 = vxpose.xlu0.b32.cont [14/16] 0.0, 128
    %749 = vxpose.xlu0.b32.cont [15/16] 0.0, 128
    %750 = vxpose.xlu0.b32.end [16/16] 0.0, 128
    %v751 = vpop.trf.xlu0
    %v752 = vpop.trf.xlu0
    %v753 = vpop.trf.xlu0
    %v754 = vpop.trf.xlu0
    %v755 = vpop.trf.xlu0
    %v756 = vpop.trf.xlu0
    %v757 = vpop.trf.xlu0
    %v758 = vpop.trf.xlu0
    %v759 = vpop.trf.xlu0
    %v760 = vpop.trf.xlu0
    %v761 = vpop.trf.xlu0
    %v762 = vpop.trf.xlu0
    %v763 = vpop.trf.xlu0
    %v764 = vpop.trf.xlu0
    %v765 = vpop.trf.xlu0
    %v766 = vpop.trf.xlu0
    %v767 = vsel %vm491, %v751, 0.0
    %v768 = vrot.slane %v767, 4
    %v769 = vadd.f32 %v767, %v768
    %v770 = vrot.slane %v769, 2
    %v771 = vadd.f32 %v769, %v770
    %v772 = vrot.slane %v771, 1
    %v773 = vadd.f32 %v771, %v772
    %v774 = vmul.f32 %v773, %v731
    %775 = vst.msk [vmem:[#allocation11 + $0x1] sm:$0x1] %vm733, %v774
    %v777 = vsel %vm491, %v689, 0
    %v780 = vsel %vm491, %v691, 0
    %782 = vmatprep.subr.mxu0 0.0
    %783 = vmatpush1.msra.mxu0 %v118
    %784 = vmatprep.subr.mxu0 0.0
    %785 = vmatpush1.msra.mxu0 0.0
    %786 = vmatprep.subr.mxu0 0.0
    %787 = vmatpush1.msra.mxu0 0.0
    %788 = vmatprep.subr.mxu0 0.0
    %789 = vmatpush1.msra.mxu0 0.0
    %790 = vmatprep.subr.mxu0 0.0
    %791 = vmatpush1.msra.mxu0 0.0
    %792 = vmatprep.subr.mxu0 0.0
    %793 = vmatpush1.msra.mxu0 0.0
    %794 = vmatprep.subr.mxu0 0.0
    %795 = vmatpush1.msra.mxu0 0.0
    %796 = vmatprep.subr.mxu0 0.0
    %797 = vmatpush1.msra.mxu0 0.0
    %798 = vmatprep.subr.mxu0 0.0
    %799 = vmatpush1.msra.mxu0 0.0
    %800 = vmatprep.subr.mxu0 0.0
    %801 = vmatpush1.msra.mxu0 0.0
    %802 = vmatprep.subr.mxu0 0.0
    %803 = vmatpush1.msra.mxu0 0.0
    %804 = vmatprep.subr.mxu0 0.0
    %805 = vmatpush1.msra.mxu0 0.0
    %806 = vmatprep.subr.mxu0 0.0
    %807 = vmatpush1.msra.mxu0 0.0
    %808 = vmatprep.subr.mxu0 0.0
    %809 = vmatpush1.msra.mxu0 0.0
    %810 = vmatprep.subr.mxu0 0.0
    %811 = vmatpush1.msra.mxu0 0.0
    %812 = vmatprep.subr.mxu0 0.0
    %813 = vmatpush1.msra.mxu0 0.0
    %814 = vmatprep.subr.mxu0 0.0
    %815 = vmatpush1.msra.mxu0 0.0
    %816 = vmatprep.subr.mxu0 0.0
    %817 = vmatpush1.msra.mxu0 0.0
    %818 = vmatprep.subr.mxu0 0.0
    %819 = vmatpush1.msra.mxu0 0.0
    %820 = vmatprep.subr.mxu0 0.0
    %821 = vmatpush1.msra.mxu0 0.0
    %822 = vmatprep.subr.mxu0 0.0
    %823 = vmatpush1.msra.mxu0 0.0
    %824 = vmatprep.subr.mxu0 0.0
    %825 = vmatpush1.msra.mxu0 0.0
    %826 = vmatprep.subr.mxu0 0.0
    %827 = vmatpush1.msra.mxu0 0.0
    %828 = vmatprep.subr.mxu0 0.0
    %829 = vmatpush1.msra.mxu0 0.0
    %830 = vmatprep.subr.mxu0 0.0
    %831 = vmatpush1.msra.mxu0 0.0
    %832 = vmatprep.subr.mxu0 0.0
    %833 = vmatpush1.msra.mxu0 0.0
    %834 = vmatprep.subr.mxu0 0.0
    %835 = vmatpush1.msra.mxu0 0.0
    %836 = vmatprep.subr.mxu0 0.0
    %837 = vmatpush1.msra.mxu0 0.0
    %838 = vmatprep.subr.mxu0 0.0
    %839 = vmatpush1.msra.mxu0 0.0
    %840 = vmatprep.subr.mxu0 0.0
    %841 = vmatpush1.msra.mxu0 0.0
    %842 = vmatprep.subr.mxu0 0.0
    %843 = vmatpush1.msra.mxu0 0.0
    %844 = vmatprep.subr.mxu0 0.0
    %845 = vmatpush1.msra.mxu0 0.0
    %846 = vmatprep.mubr.f32.mxu0 0.0
    %847 = vmatmul.mubr.f32.gmra.mrb[0].mxu0 %v777
    %v848 = vpop.f32.mrb[0].mxu0
    %v849 = vadd.f32 0.0, %v848
    %v850 = vpop.f32.mrb[0].mxu0
    %851 = vmatprep.mubr.f32.mxu0 0.0
    %852 = vmatmul.mubr.f32.gmra.mrb[0].mxu0 %v780
    %v853 = vpop.f32.mrb[0].mxu0
    %v854 = vadd.f32 0.0, %v853
    %v855 = vpop.f32.mrb[0].mxu0
    %856 = vdwg.mxu0
    %859 = vrot.lane.b32.xlu0 %v296, 96
    %v860 = vpop.permute.xlu0 %859
    %861 = vrot.lane.b32.xlu0 %v301, 96
    %v862 = vpop.permute.xlu0 %861
    %v865 = vmul.f32 %v849, %v860
    %v866 = vmul.f32 %v854, %v862
    %867 = vmatprep.subr.mxu0 0.0
    %868 = vmatpush1.msra.mxu0 %v865
    %869 = vmatprep.subr.mxu0 0.0
    %870 = vmatpush1.msra.mxu0 %v866
    %871 = vmatprep.subr.mxu0 0.0
    %872 = vmatpush1.msra.mxu0 0.0
    %873 = vmatprep.subr.mxu0 0.0
    %874 = vmatpush1.msra.mxu0 0.0
    %875 = vmatprep.subr.mxu0 0.0
    %876 = vmatpush1.msra.mxu0 0.0
    %877 = vmatprep.subr.mxu0 0.0
    %878 = vmatpush1.msra.mxu0 0.0
    %879 = vmatprep.subr.mxu0 0.0
    %880 = vmatpush1.msra.mxu0 0.0
    %881 = vmatprep.subr.mxu0 0.0
    %882 = vmatpush1.msra.mxu0 0.0
    %883 = vmatprep.subr.mxu0 0.0
    %884 = vmatpush1.msra.mxu0 0.0
    %885 = vmatprep.subr.mxu0 0.0
    %886 = vmatpush1.msra.mxu0 0.0
    %887 = vmatprep.subr.mxu0 0.0
    %888 = vmatpush1.msra.mxu0 0.0
    %889 = vmatprep.subr.mxu0 0.0
    %890 = vmatpush1.msra.mxu0 0.0
    %891 = vmatprep.subr.mxu0 0.0
    %892 = vmatpush1.msra.mxu0 0.0
    %893 = vmatprep.subr.mxu0 0.0
    %894 = vmatpush1.msra.mxu0 0.0
    %895 = vmatprep.subr.mxu0 0.0
    %896 = vmatpush1.msra.mxu0 0.0
    %897 = vmatprep.subr.mxu0 0.0
    %898 = vmatpush1.msra.mxu0 0.0
    %899 = vmatprep.subr.mxu0 0.0
    %900 = vmatpush1.msra.mxu0 0.0
    %901 = vmatprep.subr.mxu0 0.0
    %902 = vmatpush1.msra.mxu0 0.0
    %903 = vmatprep.subr.mxu0 0.0
    %904 = vmatpush1.msra.mxu0 0.0
    %905 = vmatprep.subr.mxu0 0.0
    %906 = vmatpush1.msra.mxu0 0.0
    %907 = vmatprep.subr.mxu0 0.0
    %908 = vmatpush1.msra.mxu0 0.0
    %909 = vmatprep.subr.mxu0 0.0
    %910 = vmatpush1.msra.mxu0 0.0
    %911 = vmatprep.subr.mxu0 0.0
    %912 = vmatpush1.msra.mxu0 0.0
    %913 = vmatprep.subr.mxu0 0.0
    %914 = vmatpush1.msra.mxu0 0.0
    %915 = vmatprep.subr.mxu0 0.0
    %916 = vmatpush1.msra.mxu0 0.0
    %917 = vmatprep.subr.mxu0 0.0
    %918 = vmatpush1.msra.mxu0 0.0
    %919 = vmatprep.subr.mxu0 0.0
    %920 = vmatpush1.msra.mxu0 0.0
    %921 = vmatprep.subr.mxu0 0.0
    %922 = vmatpush1.msra.mxu0 0.0
    %923 = vmatprep.subr.mxu0 0.0
    %924 = vmatpush1.msra.mxu0 0.0
    %925 = vmatprep.subr.mxu0 0.0
    %926 = vmatpush1.msra.mxu0 0.0
    %927 = vmatprep.subr.mxu0 0.0
    %928 = vmatpush1.msra.mxu0 0.0
    %929 = vmatprep.subr.mxu0 0.0
    %930 = vmatpush1.msra.mxu0 0.0
    %931 = vmatprep.mubr.f32.mxu0 0.0
    %932 = vmatmul.mubr.f32.gmra.mrb[0].mxu0 %v538
    %v933 = vpop.f32.mrb[0].mxu0
    %v934 = vadd.f32 0.0, %v933
    %v935 = vpop.f32.mrb[0].mxu0
    %936 = vdwg.mxu0
    %v937 = vld [vmem:[#allocation8] sm:$0xff]
    %v938 = vld [vmem:[#allocation8 + $0x8] sm:$0xff]
    %v939 = vld [vmem:[#allocation8 + $0x10] sm:$0xff]
    %v940 = vld [vmem:[#allocation8 + $0x18] sm:$0xff]
    %v941 = vld [vmem:[%s6] sm:$0x1]
    %v943 = vlaneseq
    %v944 = vshrl.u32 %v943, 7
    %v945 = vsub.s32 0, %v944
    %v946 = vrot.slane %v941, %v945
    %v949 = vsel %vm143, %v934, 0
    %951 = vmatprep.subr.mxu0 0.0
    %952 = vmatpush1.msra.mxu0 %v937
    %953 = vmatprep.subr.mxu0 0.0
    %954 = vmatpush1.msra.mxu0 %v938
    %955 = vmatprep.subr.mxu0 0.0
    %956 = vmatpush1.msra.mxu0 %v939
    %957 = vmatprep.subr.mxu0 0.0
    %958 = vmatpush1.msra.mxu0 %v940
    %959 = vmatprep.subr.mxu0 0.0
    %960 = vmatpush1.msra.mxu0 0.0
    %961 = vmatprep.subr.mxu0 0.0
    %962 = vmatpush1.msra.mxu0 0.0
    %963 = vmatprep.subr.mxu0 0.0
    %964 = vmatpush1.msra.mxu0 0.0
    %965 = vmatprep.subr.mxu0 0.0
    %966 = vmatpush1.msra.mxu0 0.0
    %967 = vmatprep.subr.mxu0 0.0
    %968 = vmatpush1.msra.mxu0 0.0
    %969 = vmatprep.subr.mxu0 0.0
    %970 = vmatpush1.msra.mxu0 0.0
    %971 = vmatprep.subr.mxu0 0.0
    %972 = vmatpush1.msra.mxu0 0.0
    %973 = vmatprep.subr.mxu0 0.0
    %974 = vmatpush1.msra.mxu0 0.0
    %975 = vmatprep.subr.mxu0 0.0
    %976 = vmatpush1.msra.mxu0 0.0
    %977 = vmatprep.subr.mxu0 0.0
    %978 = vmatpush1.msra.mxu0 0.0
    %979 = vmatprep.subr.mxu0 0.0
    %980 = vmatpush1.msra.mxu0 0.0
    %981 = vmatprep.subr.mxu0 0.0
    %982 = vmatpush1.msra.mxu0 0.0
    %983 = vmatprep.subr.mxu0 0.0
    %984 = vmatpush1.msra.mxu0 0.0
    %985 = vmatprep.subr.mxu0 0.0
    %986 = vmatpush1.msra.mxu0 0.0
    %987 = vmatprep.subr.mxu0 0.0
    %988 = vmatpush1.msra.mxu0 0.0
    %989 = vmatprep.subr.mxu0 0.0
    %990 = vmatpush1.msra.mxu0 0.0
    %991 = vmatprep.subr.mxu0 0.0
    %992 = vmatpush1.msra.mxu0 0.0
    %993 = vmatprep.subr.mxu0 0.0
    %994 = vmatpush1.msra.mxu0 0.0
    %995 = vmatprep.subr.mxu0 0.0
    %996 = vmatpush1.msra.mxu0 0.0
    %997 = vmatprep.subr.mxu0 0.0
    %998 = vmatpush1.msra.mxu0 0.0
    %999 = vmatprep.subr.mxu0 0.0
    %1000 = vmatpush1.msra.mxu0 0.0
    %1001 = vmatprep.subr.mxu0 0.0
    %1002 = vmatpush1.msra.mxu0 0.0
    %1003 = vmatprep.subr.mxu0 0.0
    %1004 = vmatpush1.msra.mxu0 0.0
    %1005 = vmatprep.subr.mxu0 0.0
    %1006 = vmatpush1.msra.mxu0 0.0
    %1007 = vmatprep.subr.mxu0 0.0
    %1008 = vmatpush1.msra.mxu0 0.0
    %1009 = vmatprep.subr.mxu0 0.0
    %1010 = vmatpush1.msra.mxu0 0.0
    %1011 = vmatprep.subr.mxu0 0.0
    %1012 = vmatpush1.msra.mxu0 0.0
    %1013 = vmatprep.subr.mxu0 0.0
    %1014 = vmatpush1.msra.mxu0 0.0
    %1015 = vmatprep.mubr.f32.mxu0 0.0
    %1016 = vmatmul.mubr.f32.gmra.mrb[0].mxu0 %v949
    %v1017 = vpop.f32.mrb[0].mxu0
    %v1018 = vadd.f32 %v946, %v1017
    %v1019 = vpop.f32.mrb[0].mxu0
    %1020 = vdwg.mxu0
    %vm1021 = vcmask 254976
    %1022 = vst.msk [vmem:[#allocation10] sm:$0x3] %vm1021, %v1018
    // Predicated region
    $region46: #{tpu_custom_call.1} parent=1 // pred_check
      _
    $region47: #{tpu_custom_call.1} parent=1 // pred_check_branch
      %1024 = sbr.rel (0) target = $region49
    $region48: #{tpu_custom_call.1} parent=1 // pred_region
      %s1026 = ssub.s32 32, 32
      %1027 = vsyncadd [#allocation4], %s1026
      %s1029 = sshll.u32 [#allocation10], 4
      %s1030 = int_to_ptr.vmem [resolvable:$true] %s1029
      %1032 = dma.vmem_to_hbm [thread:$0]  %s1030, 32, %s7, [#allocation4]
    $region49: #{tpu_custom_call.1} parent=1 // pred_fallthru
      _
    // Predicated region
    $region50: #{tpu_custom_call.1} parent=1 // pred_check
      _
    $region51: #{tpu_custom_call.1} parent=1 // pred_check_branch
      %1034 = sbr.rel (0) target = $region53
    $region52: #{tpu_custom_call.1} parent=1 // pred_region
      %s1036 = ssub.s32 32, 32
      %1037 = vsyncadd [#allocation12], %s1036
      %s1039 = sshll.u32 [#allocation11], 4
      %s1040 = int_to_ptr.vmem [resolvable:$true] %s1039
      %1042 = dma.vmem_to_hbm [thread:$0]  %s1040, 32, %s8, [#allocation12]
    $region53: #{tpu_custom_call.1} parent=1 // pred_fallthru
      _
    // Predicated region
    $region54: #{tpu_custom_call.1} parent=1 // pred_check
      _
    $region55: #{tpu_custom_call.1} parent=1 // pred_check_branch
      %1044 = sbr.rel (0) target = $region57
    $region56: #{tpu_custom_call.1} parent=1 // pred_region
      %1045 = dma.done [#allocation4], 32
    $region57: #{tpu_custom_call.1} parent=1 // pred_fallthru
      _
    // Predicated region
    $region58: #{tpu_custom_call.1} parent=1 // pred_check
      _
    $region59: #{tpu_custom_call.1} parent=1 // pred_check_branch
      %1047 = sbr.rel (0) target = $region61
    $region60: #{tpu_custom_call.1} parent=1 // pred_region
      %1048 = dma.done [#allocation12], 32
    $region61: #{tpu_custom_call.1} parent=1 // pred_fallthru
      _
    %1049 = vsyncpa [#allocation3], 1
    %1050 = vsyncpa [#allocation6], 1
    %1051 = vsyncpa [#allocation9], 1
    %1052 = vsyncpa [#allocation4], 1
    %1053 = vsyncpa [#allocation12], 1

</llo_original>
